<compile_context>
chip_gen: v7x
topology: tpu7x:2x2x1
jax: 0.10.0
libtpu: 0.0.40
codegen_flags: <defaults>
</compile_context>

<pallas_src>
import functools

import jax
import jax.numpy as jnp
from jax.experimental import pallas as pl
from jax.experimental.pallas import tpu as pltpu


def _ce_partial_kernel(logits_ref, labels_ref, out_ref, *,
                       ignore_index, hw, tile_hw, needs_mask):
    """One (C, tile_hw) logits slab -> one scalar partial loss sum."""
    x = logits_ref[...].astype(jnp.float32)          # (C, T)  classes on sublanes
    lbl = labels_ref[...]                            # (1, T)  int32, lane-dense

    # numerically stable log-sum-exp over the (small) class axis
    m = jnp.max(x, axis=0, keepdims=True)                                # (1, T)
    lse = m + jnp.log(jnp.sum(jnp.exp(x - m), axis=0, keepdims=True))    # (1, T)

    # target-class logit via one-hot compare over the class (sublane) axis
    class_ids = jax.lax.broadcasted_iota(jnp.int32, x.shape, 0)          # (C, T)
    picked = jnp.sum(jnp.where(class_ids == lbl, x, 0.0),
                     axis=0, keepdims=True)                              # (1, T)

    valid = lbl != ignore_index
    if needs_mask:
        # ragged last tile: mask lanes past the true H*W extent (no wrapper-side pad)
        pos = pl.program_id(1) * tile_hw + jax.lax.broadcasted_iota(
            jnp.int32, lbl.shape, 1)
        valid = jnp.logical_and(valid, pos < hw)

    loss = jnp.where(valid, lse - picked, 0.0)                           # (1, T)
    out_ref[...] = jnp.sum(loss, axis=1, keepdims=True)                  # (1, 1) partial


def _pick_tile_hw(hw, num_classes, itemsize, max_tile_hw=None):
    """Largest lane tile fitting a conservative VMEM budget (safe on v5e/v6e/v7x)."""
    budget = 12 * 1024 * 1024
    # per lane column: double-buffered logits + labels blocks, plus f32 temporaries
    # (x and exp(x - m)) materialized by the body.
    per_col = 2 * (num_classes * itemsize + 4) + 8 * num_classes
    tile = budget // per_col
    cap = 8192 if max_tile_hw is None else max_tile_hw
    tile = min(tile, cap)
    if tile >= hw:
        return hw                                   # full-extent block: always layout-legal
    return max(128, (tile // 128) * 128)            # multiple of 128 lanes


def cross_entropy_loss(cls_score, label, *, loss_weight=1.0, ignore_index=-100,
                       reduction='mean', max_tile_hw=None):
    """JAX/Pallas equivalent of mmseg CrossEntropyLoss().forward(cls_score, label).

    cls_score: (N, C, H, W) float logits (f32 or bf16)
    label    : (N, H, W)    integer class indices (ignore_index entries ignored)
    """
    N, C, H, W = cls_score.shape
    HW = H * W
    P = N * HW

    # NCHW consumed natively: free, contiguous reshapes only (no transpose / pad pass).
    logits = cls_score.reshape(N, C, HW)
    labels = label.reshape(N, 1, HW).astype(jnp.int32)

    tile_hw = _pick_tile_hw(HW, C, jnp.dtype(cls_score.dtype).itemsize, max_tile_hw)
    num_tiles = (HW + tile_hw - 1) // tile_hw
    needs_mask = (HW % tile_hw) != 0

    kernel = functools.partial(_ce_partial_kernel, ignore_index=ignore_index,
                               hw=HW, tile_hw=tile_hw, needs_mask=needs_mask)

    partials = pl.pallas_call(
        kernel,
        out_shape=jax.ShapeDtypeStruct((N, num_tiles, 1, 1), jnp.float32),
        grid_spec=pltpu.PrefetchScalarGridSpec(
            num_scalar_prefetch=0,
            grid=(N, num_tiles),
            in_specs=[
                pl.BlockSpec((None, C, tile_hw), lambda n, t: (n, 0, t)),
                pl.BlockSpec((None, 1, tile_hw), lambda n, t: (n, 0, t)),
            ],
            out_specs=pl.BlockSpec((None, None, 1, 1), lambda n, t: (n, t, 0, 0)),
        ),
        compiler_params=pltpu.CompilerParams(
            dimension_semantics=("parallel", "parallel"),
            vmem_limit_bytes=32 * 1024 * 1024),
    )(logits, labels)

    loss_sum = jnp.sum(partials)

    if reduction == 'mean':
        # mmseg: weight=None, avg_factor=None -> plain mean over ALL pixels
        loss = loss_sum / jnp.float32(P)
    elif reduction == 'sum':
        loss = loss_sum
    else:
        # TODO(synk): reduction='none' would return the per-pixel loss map instead of a scalar.
        raise NotImplementedError("reduction='none' not supported by this kernel wrapper")

    return jnp.float32(loss_weight) * loss


def _reference(cls_score, label, loss_weight=1.0, ignore_index=-100):
    """Pure-JAX reference of F.cross_entropy(..., reduction='none', ignore_index) + mean."""
    N, C, H, W = cls_score.shape
    logits = jnp.transpose(cls_score, (0, 2, 3, 1)).reshape(-1, C).astype(jnp.float32)
    lbl = label.reshape(-1)
    lse = jax.scipy.special.logsumexp(logits, axis=-1)
    picked = jnp.take_along_axis(
        logits, jnp.clip(lbl, 0, C - 1)[:, None], axis=-1)[:, 0]
    per_pix = jnp.where(lbl != ignore_index, lse - picked, 0.0)
    return jnp.float32(loss_weight) * jnp.mean(per_pix)


if __name__ == "__main__":
    key = jax.random.PRNGKey(0)
    k1, k2, k3, k4 = jax.random.split(key, 4)

    # Case 1: default shapes (single full-HW tile per sample).
    N, C, H, W = 2, 4, 16, 16
    cls_score = jax.random.normal(k1, (N, C, H, W), dtype=jnp.float32)
    label = jax.random.randint(k2, (N, H, W), 0, C, dtype=jnp.int32)
    label = label.at[0, 0, :4].set(-100)          # some ignored pixels
    out = jax.block_until_ready(cross_entropy_loss(cls_score, label, loss_weight=1.0))
    ref = _reference(cls_score, label, loss_weight=1.0)
    assert jnp.allclose(out, ref, rtol=1e-5, atol=1e-5), (out, ref)

    # Case 2: multi-tile grid with a ragged last tile (exercises in-kernel edge masking).
    N2, C2, H2, W2 = 2, 5, 13, 13                 # HW = 169, tile = 128 -> ragged tail
    cls2 = jax.random.normal(k3, (N2, C2, H2, W2), dtype=jnp.float32)
    lbl2 = jax.random.randint(k4, (N2, H2, W2), 0, C2, dtype=jnp.int32)
    lbl2 = lbl2.at[1, 2, :5].set(-100)
    out2 = jax.block_until_ready(cross_entropy_loss(cls2, lbl2, max_tile_hw=128))
    ref2 = _reference(cls2, lbl2)
    assert jnp.allclose(out2, ref2, rtol=1e-5, atol=1e-5), (out2, ref2)

    print("KERNEL_OK")
</pallas_src>

<mosaic_0001>
module attributes {stable_mosaic.version = 11 : i64} {
  func.func @_ce_partial_kernel(%arg0: i32, %arg1: i32, %arg2: memref<1x4x256xf32, #tpu.memory_space<vmem>>, %arg3: memref<1x1x256xi32, #tpu.memory_space<vmem>>, %arg4: memref<1x1x1x1xf32, #tpu.memory_space<vmem>>) attributes {dimension_semantics = [#tpu.dimension_semantics<parallel>, #tpu.dimension_semantics<parallel>], iteration_bounds = array<i64: 2, 1>, scalar_prefetch = 0 : i64, scratch_operands = 0 : i64, tpu.core_type = #tpu.core_type<tc>, window_params = [{transform_indices = @transform_0, window_bounds = array<i64: 1, 4, 256>}, {transform_indices = @transform_1, window_bounds = array<i64: 1, 1, 256>}, {transform_indices = @transform_2, window_bounds = array<i64: 1, 1, 1, 1>}]} {
    %c0 = arith.constant 0 : index
    %c0_0 = arith.constant 0 : index
    %c0_1 = arith.constant 0 : index
    %0 = vector.load %arg2[%c0, %c0_0, %c0_1] : memref<1x4x256xf32, #tpu.memory_space<vmem>>, vector<1x4x256xf32>
    %1 = vector.shape_cast %0 : vector<1x4x256xf32> to vector<4x256xf32>
    %c0_2 = arith.constant 0 : index
    %c0_3 = arith.constant 0 : index
    %c0_4 = arith.constant 0 : index
    %2 = vector.load %arg3[%c0_2, %c0_3, %c0_4] : memref<1x1x256xi32, #tpu.memory_space<vmem>>, vector<1x1x256xi32>
    %3 = vector.shape_cast %2 : vector<1x1x256xi32> to vector<1x256xi32>
    %cst = arith.constant dense<0xFF800000> : vector<256xf32>
    %4 = vector.multi_reduction <maximumf>, %1, %cst [0] : vector<4x256xf32> to vector<256xf32>
    %5 = vector.shape_cast %4 : vector<256xf32> to vector<1x256xf32>
    %6 = vector.broadcast %5 : vector<1x256xf32> to vector<4x256xf32>
    %7 = arith.subf %1, %6 : vector<4x256xf32>
    %8 = math.exp %7 : vector<4x256xf32>
    %cst_5 = arith.constant dense<0.000000e+00> : vector<256xf32>
    %9 = vector.multi_reduction <add>, %8, %cst_5 [0] : vector<4x256xf32> to vector<256xf32>
    %10 = vector.shape_cast %9 : vector<256xf32> to vector<1x256xf32>
    %11 = math.log %10 : vector<1x256xf32>
    %12 = arith.addf %5, %11 : vector<1x256xf32>
    %13 = tpu.iota {dimensions = array<i32: 0>} : vector<4x256xi32>
    %14 = vector.broadcast %3 : vector<1x256xi32> to vector<4x256xi32>
    %15 = arith.cmpi eq, %13, %14 : vector<4x256xi32>
    %cst_6 = arith.constant 0.000000e+00 : f32
    %16 = vector.broadcast %cst_6 : f32 to vector<4x256xf32>
    %17 = arith.select %15, %1, %16 : vector<4x256xi1>, vector<4x256xf32>
    %cst_7 = arith.constant dense<0.000000e+00> : vector<256xf32>
    %18 = vector.multi_reduction <add>, %17, %cst_7 [0] : vector<4x256xf32> to vector<256xf32>
    %19 = vector.shape_cast %18 : vector<256xf32> to vector<1x256xf32>
    %c-100_i32 = arith.constant -100 : i32
    %20 = vector.broadcast %c-100_i32 : i32 to vector<1x256xi32>
    %21 = arith.cmpi ne, %3, %20 : vector<1x256xi32>
    %22 = arith.subf %12, %19 : vector<1x256xf32>
    %cst_8 = arith.constant 0.000000e+00 : f32
    %23 = vector.broadcast %cst_8 : f32 to vector<1x256xf32>
    %24 = arith.select %21, %22, %23 : vector<1x256xi1>, vector<1x256xf32>
    %cst_9 = arith.constant dense<0.000000e+00> : vector<1xf32>
    %25 = vector.multi_reduction <add>, %24, %cst_9 [1] : vector<1x256xf32> to vector<1xf32>
    %26 = vector.shape_cast %25 : vector<1xf32> to vector<1x1xf32>
    %c0_10 = arith.constant 0 : index
    %c0_11 = arith.constant 0 : index
    %c0_12 = arith.constant 0 : index
    %c0_13 = arith.constant 0 : index
    %27 = vector.load %arg4[%c0_10, %c0_11, %c0_12, %c0_13] : memref<1x1x1x1xf32, #tpu.memory_space<vmem>>, vector<1x1x1x1xf32>
    %28 = vector.shape_cast %27 : vector<1x1x1x1xf32> to vector<1x1xf32>
    %29 = vector.shape_cast %26 : vector<1x1xf32> to vector<1x1x1x1xf32>
    tpu.vector_store %arg4[%c0_10, %c0_11, %c0_12, %c0_13], %29 {strides = array<i32>} : memref<1x1x1x1xf32, #tpu.memory_space<vmem>>, vector<1x1x1x1xf32>,
    return
  }
  func.func @transform_0(%arg0: i32, %arg1: i32) -> (i32, i32, i32) {
    %c0_i32 = arith.constant 0 : i32
    %c0_i32_0 = arith.constant 0 : i32
    return %arg0, %c0_i32, %arg1 : i32, i32, i32
  }
  func.func @transform_1(%arg0: i32, %arg1: i32) -> (i32, i32, i32) {
    %c0_i32 = arith.constant 0 : i32
    %c0_i32_0 = arith.constant 0 : i32
    return %arg0, %c0_i32, %arg1 : i32, i32, i32
  }
  func.func @transform_2(%arg0: i32, %arg1: i32) -> (i32, i32, i32, i32) {
    %c0_i32 = arith.constant 0 : i32
    %c0_i32_0 = arith.constant 0 : i32
    %c0_i32_1 = arith.constant 0 : i32
    return %arg0, %arg1, %c0_i32, %c0_i32_0 : i32, i32, i32, i32
  }
}

</mosaic_0001>

<llo_original>
// kernel: tpu_custom_call.1
$region0: #{tpu_custom_call.1}
  #allocation0 [shape = 'u32[]', space=smem, size = 0x4, offset = 0x4, fixed_abs, tag = 'smem constant byte address 0x4 - core index']
  #allocation1 [shape = 'u32[144,128]{1,0:T(1,128)}', space=vmem, size = 0x12000, scoped, tag = 'internal scratch']
  %s0 = inlined_call_operand.hbm [shape: f32[2,4,256], index: 0, kind: input, shape index: {}]
  %s1 = inlined_call_operand.hbm [shape: s32[2,1,256], index: 1, kind: input, shape index: {}]
  %s2 = inlined_call_operand.vmem [shape: f32[2,1,1,1], index: 2, kind: output, shape index: {}]
  %s3 = sld [smem:[#allocation0]]
  $region49: #{tpu_custom_call.1} parent=0
    _
  %s5 = ssub.s32 1, %s3
  %s6 = scalar_select 0, %s5, %s3
  $region1: #{tpu_custom_call.1} parent=0
    #allocation2 [shape = 'u8[8192]{0}', space=vmem, size = 0x2000, scoped, tag = 'input window, operand 0']
    #allocation3 [shape = 's32[2]{0}', space=sflag, size = 0x8, scoped, tag = 'scoped memory for tpu_custom_call.1']
    #allocation4 [shape = 'u8[2048]{0}', space=vmem, size = 0x800, scoped, tag = 'input window, operand 1']
    #allocation5 [shape = 's32[2]{0}', space=sflag, size = 0x8, scoped, tag = 'scoped memory for tpu_custom_call.1']
    %7 = vsyncpa [#allocation3], 0
    %s8 = scalar_lea.sflag [#allocation3], 1
    %9 = vsyncpa %s8, 0
    %10 = vsyncpa [#allocation5], 0
    %s11 = scalar_lea.sflag [#allocation5], 1
    %12 = vsyncpa %s11, 0
    loop: start=0, step=1, limit=4
    $region2: #{tpu_custom_call.1} parent=1 // loop_pre_header
      _
    $region3: #{tpu_custom_call.1} parent=1 // loop_header
      %s14 = sphi 0, %s18
      %p15 = scmp.ge.s32.totalorder %s14, 4
      %s21 = sphi 0, %s33
      %s22 = sphi 0, %s29
      %s23 = sphi 0, %s21
      %s24 = sphi 0, %s22
      %s25 = sphi 0, %s23
      %s26 = sphi 0, %s24
      %s38 = sphi 0, %s40
      %s41 = sphi 0, %s38
      %s42 = sphi 0, %s41
      %s58 = sphi 0, %s42
      %s66 = sphi 0, %s68
      %s69 = sphi 0, %s66
      %s70 = sphi 0, %s69
      %s86 = sphi 0, %s70
      %s94 = sphi 0, %s96
      %s97 = sphi 0, %s94
      %s98 = sphi 0, %s97
      %s114 = sphi 0, %s98
    $region4: #{tpu_custom_call.1} parent=1 // loop_header_branch
      %17 = sbr.rel (%p15) target = $region8
    $region5: #{tpu_custom_call.1} parent=1 // loop_body
      %s19 = ssub.s32 %s14, 1
      %s20 = ssub.s32 %s14, 2
      %s27 = sadd.s32 1, %s22
      %p28 = scmp.ge.s32.totalorder %s27, 1
      %s29 = scalar_select %p28, 0, %s27
      %s30 = sadd.s32 1, %s21
      %s31 = scalar_select %p28, %s30, %s21
      %p32 = scmp.ge.s32.totalorder %s31, 2
      %s33 = scalar_select %p32, 0, %s31
      %s34 = ssub.s32 %s21, %s33
      %s35 = ssub.s32 %s22, %s29
      %s36 = sor.u32 %s34, %s35
      %p37 = scmp.eq.s32.totalorder %s36, 0
      %s39 = sadd.s32 %s38, 1
      %s40 = scalar_select %p37, %s38, %s39
      %p43 = pneg %p37
      %p44 = scmp.eq.s32.totalorder %s14, 1
      %p45 = por %p43, %p44
      %p46 = scmp.ne.s32.totalorder %s38, %s41
      %p47 = scmp.eq.s32.totalorder %s14, 0
      %p48 = por %p46, %p47
      %p49 = scmp.ne.s32.totalorder %s38, %s41
      %p50 = scmp.eq.s32.totalorder %s19, 1
      %p51 = por %p49, %p50
      %p52 = scmp.ne.s32.totalorder %s41, %s42
      %p53 = scmp.eq.s32.totalorder %s19, 0
      %p54 = por %p52, %p53
      %p55 = scmp.ne.s32.totalorder %s41, %s42
      %p56 = scmp.eq.s32.totalorder %s20, 1
      %p57 = por %p55, %p56
      %p59 = scmp.ne.s32.totalorder %s42, %s58
      %p60 = scmp.eq.s32.totalorder %s20, 0
      %p61 = por %p59, %p60
      %s62 = ssub.s32 %s21, %s33
      %s63 = ssub.s32 %s22, %s29
      %s64 = sor.u32 %s62, %s63
      %p65 = scmp.eq.s32.totalorder %s64, 0
      %s67 = sadd.s32 %s66, 1
      %s68 = scalar_select %p65, %s66, %s67
      %p71 = pneg %p65
      %p72 = scmp.eq.s32.totalorder %s14, 1
      %p73 = por %p71, %p72
      %p74 = scmp.ne.s32.totalorder %s66, %s69
      %p75 = scmp.eq.s32.totalorder %s14, 0
      %p76 = por %p74, %p75
      %p77 = scmp.ne.s32.totalorder %s66, %s69
      %p78 = scmp.eq.s32.totalorder %s19, 1
      %p79 = por %p77, %p78
      %p80 = scmp.ne.s32.totalorder %s69, %s70
      %p81 = scmp.eq.s32.totalorder %s19, 0
      %p82 = por %p80, %p81
      %p83 = scmp.ne.s32.totalorder %s69, %s70
      %p84 = scmp.eq.s32.totalorder %s20, 1
      %p85 = por %p83, %p84
      %p87 = scmp.ne.s32.totalorder %s70, %s86
      %p88 = scmp.eq.s32.totalorder %s20, 0
      %p89 = por %p87, %p88
      %s90 = ssub.s32 %s21, %s33
      %s91 = ssub.s32 %s22, %s29
      %s92 = sor.u32 %s90, %s91
      %p93 = scmp.eq.s32.totalorder %s92, 0
      %s95 = sadd.s32 %s94, 1
      %s96 = scalar_select %p93, %s94, %s95
      %p99 = pneg %p93
      %p100 = scmp.eq.s32.totalorder %s14, 1
      %p101 = por %p99, %p100
      %p102 = scmp.ne.s32.totalorder %s94, %s97
      %p103 = scmp.eq.s32.totalorder %s14, 0
      %p104 = por %p102, %p103
      %p105 = scmp.ne.s32.totalorder %s94, %s97
      %p106 = scmp.eq.s32.totalorder %s19, 1
      %p107 = por %p105, %p106
      %p108 = scmp.ne.s32.totalorder %s97, %s98
      %p109 = scmp.eq.s32.totalorder %s19, 0
      %p110 = por %p108, %p109
      %p111 = scmp.ne.s32.totalorder %s97, %s98
      %p112 = scmp.eq.s32.totalorder %s20, 1
      %p113 = por %p111, %p112
      %p115 = scmp.ne.s32.totalorder %s98, %s114
      %p116 = scmp.eq.s32.totalorder %s20, 0
      %p117 = por %p115, %p116
      %p118 = scmp.le.s32.totalorder 1, %s14
      %p119 = scmp.lt.s32.totalorder %s14, 3
      %p120 = pnand %p118, %p119
      %p121 = pneg %p120
      // Predicated region
      $region9: #{tpu_custom_call.1} parent=5 // pred_check
        _
      $region10: #{tpu_custom_call.1} parent=5 // pred_check_branch
        %123 = sbr.rel (%p120) target = $region12
      $region11: #{tpu_custom_call.1} parent=5 // pred_region
        %s124 = ssub.s32 %s14, 1
      $region12: #{tpu_custom_call.1} parent=5 // pred_fallthru
        _
      %p125 = scmp.lt.s32.totalorder %s14, 2
      // Predicated region
      $region13: #{tpu_custom_call.1} parent=5 // pred_check
        %p126 = pneg %p125
      $region14: #{tpu_custom_call.1} parent=5 // pred_check_branch
        %128 = sbr.rel (%p126) target = $region16
      $region15: #{tpu_custom_call.1} parent=5 // pred_region
        // Predicated region
        $region17: #{tpu_custom_call.1} parent=15 // pred_check
          %p129 = pneg %p48
        $region18: #{tpu_custom_call.1} parent=15 // pred_check_branch
          %131 = sbr.rel (%p129) target = $region20
        $region19: #{tpu_custom_call.1} parent=15 // pred_region
          %s132 = sand.u32 %s38, 1
          %s133 = scalar_lea.sflag [#allocation3], %s132
          %s134 = sand.u32 %s38, 1
          %s135 = smul.addr %s134, 8
          %s136 = scalar_lea.vmem [#allocation2], %s135
          %s137 = smul.u32 2, %s22
          %s139 = ssub.s32 128, 128
          %140 = vsyncadd %s133, %s139
          %s141 = smul.addr %s21, 2
          %s142 = sadd.s32 %s137, %s141
          %s143 = smul.addr %s142, 64
          %s144 = scalar_lea.hbm %s0, %s143
          %s146 = sshll.u32 %s136, 4
          %s147 = int_to_ptr.vmem [resolvable:$true] %s146
          %149 = dma.hbm_to_vmem [thread:$0]  %s144, 128, %s147, %s133
        $region20: #{tpu_custom_call.1} parent=15 // pred_fallthru
          _
        // Predicated region
        $region21: #{tpu_custom_call.1} parent=15 // pred_check
          %p150 = pneg %p76
        $region22: #{tpu_custom_call.1} parent=15 // pred_check_branch
          %152 = sbr.rel (%p150) target = $region24
        $region23: #{tpu_custom_call.1} parent=15 // pred_region
          %s153 = sand.u32 %s66, 1
          %s154 = scalar_lea.sflag [#allocation5], %s153
          %s155 = sand.u32 %s66, 1
          %s156 = smul.addr %s155, 2
          %s157 = scalar_lea.vmem [#allocation4], %s156
          %s158 = smul.u32 2, %s22
          %s160 = ssub.s32 32, 32
          %161 = vsyncadd %s154, %s160
          %s162 = smul.addr %s21, 2
          %s163 = sadd.s32 %s158, %s162
          %s164 = smul.addr %s163, 16
          %s165 = scalar_lea.hbm %s1, %s164
          %s167 = sshll.u32 %s157, 4
          %s168 = int_to_ptr.vmem [resolvable:$true] %s167
          %170 = dma.hbm_to_vmem [thread:$0]  %s165, 32, %s168, %s154
        $region24: #{tpu_custom_call.1} parent=15 // pred_fallthru
          _
      $region16: #{tpu_custom_call.1} parent=5 // pred_fallthru
        _
      %p171 = scmp.le.s32.totalorder 1, %s14
      %p172 = scmp.lt.s32.totalorder %s14, 3
      %p173 = pnand %p171, %p172
      %p174 = pneg %p173
      // Predicated region
      $region25: #{tpu_custom_call.1} parent=5 // pred_check
        _
      $region26: #{tpu_custom_call.1} parent=5 // pred_check_branch
        %176 = sbr.rel (%p173) target = $region28
      $region27: #{tpu_custom_call.1} parent=5 // pred_region
        %s177 = ssub.s32 %s14, 1
        %s178 = sand.u32 %s41, 1
        %s179 = scalar_lea.sflag [#allocation3], %s178
        %s180 = sand.u32 %s41, 1
        %s181 = smul.addr %s180, 8
        %s182 = scalar_lea.vmem [#allocation2], %s181
        // Predicated region
        $region29: #{tpu_custom_call.1} parent=27 // pred_check
          %p183 = pneg %p54
        $region30: #{tpu_custom_call.1} parent=27 // pred_check_branch
          %185 = sbr.rel (%p183) target = $region32
        $region31: #{tpu_custom_call.1} parent=27 // pred_region
          %186 = dma.done %s179, 128
        $region32: #{tpu_custom_call.1} parent=27 // pred_fallthru
          _
        %s187 = sand.u32 %s69, 1
        %s188 = scalar_lea.sflag [#allocation5], %s187
        %s189 = sand.u32 %s69, 1
        %s190 = smul.addr %s189, 2
        %s191 = scalar_lea.vmem [#allocation4], %s190
        // Predicated region
        $region33: #{tpu_custom_call.1} parent=27 // pred_check
          %p192 = pneg %p82
        $region34: #{tpu_custom_call.1} parent=27 // pred_check_branch
          %194 = sbr.rel (%p192) target = $region36
        $region35: #{tpu_custom_call.1} parent=27 // pred_region
          %195 = dma.done %s188, 32
        $region36: #{tpu_custom_call.1} parent=27 // pred_fallthru
          _
        %s196 = sand.u32 %s41, 1
        %s197 = scalar_lea.sflag [#allocation3], %s196
        %s198 = sand.u32 %s41, 1
        %s199 = smul.addr %s198, 8
        %s200 = scalar_lea.vmem [#allocation2], %s199
        %p201 = pneg %p54
        %p202 = pneg %p51
        %s203 = sand.u32 %s69, 1
        %s204 = scalar_lea.sflag [#allocation5], %s203
        %s205 = sand.u32 %s69, 1
        %s206 = smul.addr %s205, 2
        %s207 = scalar_lea.vmem [#allocation4], %s206
        %p208 = pneg %p82
        %p209 = pneg %p79
        %p210 = pneg %p110
        %p211 = pneg %p107
        %p212 = scmp.lt.s32.totalorder %s23, 1
        %s213 = scalar_select %p212, %s23, 1
        %p214 = scmp.lt.s32.totalorder %s24, 0
        %s215 = scalar_select %p214, %s24, 0
        %s216 = sadd.s32 %s215, %s213
        %s217 = scalar_lea.vmem %s2, %s216
        %s218 = smul.u32 2, %s24
        %s219 = smul.u32 2, %s24
        %p220 = scmp.lt.s32.totalorder %s23, 1
        %s221 = scalar_select %p220, %s23, 1
        %p222 = scmp.lt.s32.totalorder %s24, 0
        %s223 = scalar_select %p222, %s24, 0
        %s224 = sadd.s32 %s223, %s221
        %s225 = scalar_lea.vmem %s2, %s224
        %v226 = vld [vmem:[%s182] sm:$0xff]
        %v227 = vld [vmem:[%s191] sm:$0x3]
        %v229 = vcombine.high %v226, %v226
        %vm231 = vcmask 1043456
        %v232 = vsel %vm231, %v226, -inf
        %v233 = vrot.slane %v232, 4
        %v234 = vmax.f32 %v232, %v233
        %v235 = vrot.slane %v234, 2
        %v236 = vmax.f32 %v234, %v235
        %v237 = vrot.slane %v236, 1
        %v238 = vmax.f32 %v236, %v237
        %v239 = vsel %vm231, %v229, -inf
        %v240 = vrot.slane %v239, 4
        %v241 = vmax.f32 %v239, %v240
        %v242 = vrot.slane %v241, 2
        %v243 = vmax.f32 %v241, %v242
        %v244 = vrot.slane %v243, 1
        %v245 = vmax.f32 %v243, %v244
        %v248 = vcombine.low %v238, %v245
        %v250 = vsub.f32 %v226, %v248
        %v251 = vmul.f32 %v250, 1.442695
        %v252 = vpow.pop %v251
        %v254 = vcombine.high %v252, %v252
        %v256 = vsel %vm231, %v252, 0.0
        %v257 = vrot.slane %v256, 4
        %v258 = vadd.f32 %v256, %v257
        %v259 = vrot.slane %v258, 2
        %v260 = vadd.f32 %v258, %v259
        %v261 = vrot.slane %v260, 1
        %v262 = vadd.f32 %v260, %v261
        %v263 = vsel %vm231, %v254, 0.0
        %v264 = vrot.slane %v263, 4
        %v265 = vadd.f32 %v263, %v264
        %v266 = vrot.slane %v265, 2
        %v267 = vadd.f32 %v265, %v266
        %v268 = vrot.slane %v267, 1
        %v269 = vadd.f32 %v267, %v268
        %v270 = vlog2.pop %v262
        %v271 = vmul.f32 %v270, 0.6931472
        %v272 = vlog2.pop %v269
        %v273 = vmul.f32 %v272, 0.6931472
        %v274 = vadd.f32 %v238, %v271
        %v275 = vadd.f32 %v245, %v273
        %v276 = vlaneseq
        %v277 = vshrl.u32 %v276, 7
        %v278 = vlaneseq
        %v279 = vshrl.u32 %v278, 7
        %v280 = vsub.s32 0, %v279
        %v281 = vrot.slane %v227, %v280
        %v282 = vlaneseq
        %v283 = vshrl.u32 %v282, 7
        %v284 = vsub.s32 1, %v283
        %v285 = vrot.slane %v227, %v284
        %vm286 = vcmp.eq.s32.totalorder %v277, %v281
        %vm287 = vcmp.eq.s32.totalorder %v277, %v285
        %v288 = vsel %vm286, %v226, 0.0
        %v289 = vsel %vm287, %v229, 0.0
        %v290 = vsel %vm231, %v288, 0.0
        %v291 = vrot.slane %v290, 4
        %v292 = vadd.f32 %v290, %v291
        %v293 = vrot.slane %v292, 2
        %v294 = vadd.f32 %v292, %v293
        %v295 = vrot.slane %v294, 1
        %v296 = vadd.f32 %v294, %v295
        %v297 = vsel %vm231, %v289, 0.0
        %v298 = vrot.slane %v297, 4
        %v299 = vadd.f32 %v297, %v298
        %v300 = vrot.slane %v299, 2
        %v301 = vadd.f32 %v299, %v300
        %v302 = vrot.slane %v301, 1
        %v303 = vadd.f32 %v301, %v302
        %vm304 = vcmp.ne.s32.totalorder %v227, 4294967196
        %v305 = vsub.f32 %v274, %v296
        %v306 = vsub.f32 %v275, %v303
        %v309 = vcombine.low %v305, %v306
        %v311 = vunpack.c.l.s4 1966171168
        %v312 = vunpack.c.0.s8 %v311
        %v313 = vlaneseq
        %v314 = vshrl.u32 %v313, 7
        %v315 = vsub.s32 %v312, %v314
        %v316 = vrot.slane %v309, %v315
        %v318 = vunpack.c.l.s4 1966171168
        %v319 = vunpack.c.0.s8 %v318
        %v320 = vlaneseq
        %v321 = vshrl.u32 %v320, 7
        %v322 = vsub.s32 %v319, %v321
        %v323 = vrot.slane %v316, %v322
        %v325 = vsel %vm304, %v323, 0.0
        %v327 = vlaneseq
        %v328 = vshrl.u32 %v327, 7
        %v329 = vsub.s32 0, %v328
        %v330 = vrot.slane %v325, %v329
        %v331 = vlaneseq
        %v332 = vshrl.u32 %v331, 7
        %v333 = vsub.s32 1, %v332
        %v334 = vrot.slane %v325, %v333
        %vm337 = vcmask 1040384
        %v338 = vsel %vm337, %v330, 0.0
        %v339 = vsel %vm337, %v334, 0.0
        %v340 = vadd.f32 %v338, %v339
        %341 = vadd.xlane.f32.xlu0 %v340
        %v342 = vpop.xlane.xlu0 %341
        %vm343 = vcmask 0
        %344 = vst.msk [vmem:[%s225] sm:$0x1] %vm343, %v342
        %p345 = scmp.lt.s32.totalorder %s23, 1
        %s346 = scalar_select %p345, %s23, 1
        %p347 = scmp.lt.s32.totalorder %s24, 0
        %s348 = scalar_select %p347, %s24, 0
        %s349 = sadd.s32 %s348, %s346
        %s350 = scalar_lea.vmem %s2, %s349
        // Predicated region
        $region37: #{tpu_custom_call.1} parent=27 // pred_check
          %p351 = pneg %p107
        $region38: #{tpu_custom_call.1} parent=27 // pred_check_branch
          %353 = sbr.rel (%p351) target = $region40
        $region39: #{tpu_custom_call.1} parent=27 // pred_region
          _
        $region40: #{tpu_custom_call.1} parent=27 // pred_fallthru
          _
      $region28: #{tpu_custom_call.1} parent=5 // pred_fallthru
        _
      %p354 = scmp.le.s32.totalorder 2, %s14
      // Predicated region
      $region41: #{tpu_custom_call.1} parent=5 // pred_check
        %p355 = pneg %p354
      $region42: #{tpu_custom_call.1} parent=5 // pred_check_branch
        %357 = sbr.rel (%p355) target = $region44
      $region43: #{tpu_custom_call.1} parent=5 // pred_region
        %s358 = ssub.s32 %s14, 2
        // Predicated region
        $region45: #{tpu_custom_call.1} parent=43 // pred_check
          %p359 = pneg %p113
        $region46: #{tpu_custom_call.1} parent=43 // pred_check_branch
          %361 = sbr.rel (%p359) target = $region48
        $region47: #{tpu_custom_call.1} parent=43 // pred_region
          %p362 = scmp.lt.s32.totalorder %s25, 1
          %s363 = scalar_select %p362, %s25, 1
          %p364 = scmp.lt.s32.totalorder %s26, 0
          %s365 = scalar_select %p364, %s26, 0
          %s366 = sadd.s32 %s365, %s363
          %s367 = scalar_lea.vmem %s2, %s366
        $region48: #{tpu_custom_call.1} parent=43 // pred_fallthru
          _
      $region44: #{tpu_custom_call.1} parent=5 // pred_fallthru
        _
    $region6: #{tpu_custom_call.1} parent=1 // loop_footer
      %s18 = sadd.s32 1, %s14
    $region7: #{tpu_custom_call.1} parent=1 // loop_footer_branch
      %13 = sbr.rel target = $region3
    $region8: #{tpu_custom_call.1} parent=1 // loop_exit
      _
    %368 = vsyncpa [#allocation3], 1
    %s369 = scalar_lea.sflag [#allocation3], 1
    %370 = vsyncpa %s369, 1
    %371 = vsyncpa [#allocation5], 1
    %s372 = scalar_lea.sflag [#allocation5], 1
    %373 = vsyncpa %s372, 1

</llo_original>
